<compile_context>
chip_gen: v6e
topology: v6e:2x2x1
jax: 0.10.0
libtpu: 0.0.40
codegen_flags: <defaults>
</compile_context>

<pallas_src>
import jax
import jax.numpy as jnp
from jax.experimental import pallas as pl
from jax.experimental.pallas import tpu as pltpu

_FEAT = 16 * 4 * 4  # 256


def unflatten(x):
    """Reproduce UnFlatten.forward exactly: x.view(B, 16, 4, 4).

    A torch .view is metadata-only; the fastest kernel is no kernel.
    Accepts any input whose trailing dims flatten to 256.
    """
    B = x.shape[0]
    feat = 1
    for d in x.shape[1:]:
        feat *= d
    assert feat == _FEAT, f"expected {_FEAT} trailing elements, got {feat}"
    return x.reshape(B, 16, 4, 4)


# ---------------------------------------------------------------------------
# Optional materialized-copy path (only if a fresh buffer is truly required).
# Single HBM→HBM DMA — no VMEM staging, no grid, no masked stores.
# ---------------------------------------------------------------------------
def _hbm_copy_kernel(x_hbm, o_hbm, dma_sem):
    cp = pltpu.make_async_copy(x_hbm, o_hbm, dma_sem)
    cp.start()
    cp.wait()


def unflatten_copy(x):
    """UnFlatten with an explicitly materialized output buffer.

    Semantically identical to `unflatten`, but produces a fresh array via a
    single HBM→HBM DMA (pure bandwidth-bound, the floor on all generations).
    """
    B = x.shape[0]
    feat = 1
    for d in x.shape[1:]:
        feat *= d
    assert feat == _FEAT, f"expected {_FEAT} trailing elements, got {feat}"

    # Metadata-only, row-major flatten (matches torch.view).
    x2d = x.reshape(B, _FEAT)
    itemsize = jnp.dtype(x2d.dtype).itemsize

    out2d = pl.pallas_call(
        _hbm_copy_kernel,
        out_shape=jax.ShapeDtypeStruct((B, _FEAT), x2d.dtype),
        in_specs=[pl.BlockSpec(memory_space=pl.ANY)],
        out_specs=pl.BlockSpec(memory_space=pl.ANY),
        scratch_shapes=[pltpu.SemaphoreType.DMA(())],
        cost_estimate=pl.CostEstimate(
            flops=0,
            transcendentals=0,
            bytes_accessed=2 * B * _FEAT * itemsize,
        ),
    )(x2d)

    # Metadata-only reshape to NCHW [B, 16, 4, 4].
    return out2d.reshape(B, 16, 4, 4)


if __name__ == "__main__":
    key = jax.random.PRNGKey(0)

    # Small shape consistent with the module's caller: [B, 256] latent vector.
    B = 2
    x = jax.random.normal(key, (B, _FEAT), dtype=jnp.float32)
    ref = x.reshape(B, 16, 4, 4)

    # Default path: pure metadata reshape (no kernel — the recommended path).
    y_view = jax.block_until_ready(unflatten(x))
    assert y_view.shape == (B, 16, 4, 4)
    assert y_view.dtype == x.dtype
    assert bool(jnp.array_equal(y_view, ref))

    # Pallas path: single HBM→HBM DMA copy (only when a fresh buffer is needed).
    y_copy = jax.block_until_ready(unflatten_copy(x))
    assert y_copy.shape == (B, 16, 4, 4)
    assert y_copy.dtype == x.dtype
    assert bool(jnp.array_equal(y_copy, ref))

    # Also exercise an input with extra trailing singleton dims, e.g. [B,256,1,1].
    x4 = x.reshape(B, _FEAT, 1, 1)
    y4 = jax.block_until_ready(unflatten_copy(x4))
    assert bool(jnp.array_equal(y4, ref))

    print("KERNEL_OK")
</pallas_src>

<mosaic_0001>
module attributes {stable_mosaic.version = 11 : i64} {
  func.func @_hbm_copy_kernel(%arg0: memref<2x256xf32, #tpu.memory_space<any>>, %arg1: memref<2x256xf32, #tpu.memory_space<any>>, %arg2: memref<!tpu.dma_semaphore, #tpu.memory_space<semaphore_mem>>) attributes {dimension_semantics = [], scalar_prefetch = 0 : i64, scratch_operands = 1 : i64, tpu.core_type = #tpu.core_type<tc>} {
    tpu.enqueue_dma source(%arg0 : memref<2x256xf32, #tpu.memory_space<any>>) target(%arg1 : memref<2x256xf32, #tpu.memory_space<any>>) target_semaphore(%arg2 : memref<!tpu.dma_semaphore, #tpu.memory_space<semaphore_mem>>)
    tpu.wait_dma2 semaphore(%arg2 : memref<!tpu.dma_semaphore, #tpu.memory_space<semaphore_mem>>) src(%arg0 : memref<2x256xf32, #tpu.memory_space<any>>) dst(%arg1 : memref<2x256xf32, #tpu.memory_space<any>>)
    return
  }
}

</mosaic_0001>

<llo_original>
// kernel: tpu_custom_call.1
$region0: #{tpu_custom_call.1}
  #allocation0 [shape = 'u32[]', space=smem, size = 0x4, offset = 0x4, fixed_abs, tag = 'smem constant byte address 0x4 - core index']
  #allocation1 [shape = 'u32[144,128]{1,0:T(1,128)}', space=vmem, size = 0x12000, scoped, tag = 'internal scratch']
  #allocation2 [shape = 's32[1]{0}', space=sflag, size = 0x4, scoped, tag = 'scratch operand']
  #allocation3 [shape = 's32[]', space=sflag, size = 0x4, offset = 0, fixed_abs, tag = 'sflag constant byte address 0x0 - dummy sync flag']
  #allocation4 [shape = 'u32[0]{0}', space=smem, size = 0, offset = 0, fixed_abs, tag = 'smem constant byte address 0x0 - null']
  %s0 = inlined_call_operand.hbm [shape: f32[2,256], index: 0, kind: input, shape index: {}]
  %s1 = inlined_call_operand.hbm [shape: f32[2,256], index: 1, kind: output, shape index: {}]
  %s2 = sld [smem:[#allocation0]]
  $region2: #{tpu_custom_call.1} parent=0
    _
  %s4 = ssub.s32 1, %s2
  %s5 = scalar_select 0, %s4, %s2
  %s7 = sshll.u32 1, 14
  %s8 = sxor.u32 4294967295, %s7
  %12 = dma.general %s0, 64, %s1, [#allocation2], 131072, [#allocation4], 0, 0
  %s13 = smul.u32 2, 1
  %s14 = smul.u32 %s13, 2
  %s15 = sshll.u32 %s14, 4
  %16 = dma.done [#allocation2], %s15
  %17 = vsyncmov [#allocation2]
  %s18 = vpop.sfrf %17
  %p19 = scmp.eq.s32.totalorder %s18, 0
  %p20 = pneg %p19
  %22 = shalt.err (%p20)

</llo_original>
